<compile_context>
chip_gen: v5e
topology: v5e:2x2
jax: 0.10.0
libtpu: 0.0.40
codegen_flags: <defaults>
</compile_context>

<pallas_src>
import jax
import jax.numpy as jnp
from jax import lax
from jax.experimental import pallas as pl
from jax.experimental.pallas import tpu as pltpu


# ---------------------------------------------------------------------------
# stride == 1 kernel: channel-major, flat-spatial (lane-dense) layout
# ---------------------------------------------------------------------------
def _make_kernel_s1(H, W, Cin, Cout, bN):
    HW = H * W
    w_pow2 = (W & (W - 1)) == 0

    def kernel(x_ref, dw_ref, b1_ref, w_ref, b2_ref, s3_ref, b3_ref, o_ref, act_ref):
        # ---- hoisted per-lane coordinates, boundary masks and weight loads ----
        p = lax.broadcasted_iota(jnp.int32, (1, HW), 1)
        col = (p & (W - 1)) if w_pow2 else (p % W)
        m_top = p >= W            # valid input row >= 0      (kh == 0 taps)
        m_bot = p < HW - W        # valid input row <= H - 1  (kh == 2 taps)
        m_left = col >= 1         # valid input col >= 0      (kw == 0 taps)
        m_right = col <= W - 2    # valid input col <= W - 1  (kw == 2 taps)

        dw = dw_ref[...]          # [Cin, 9]  (BN scale s1 already folded in)
        b1 = b1_ref[...]          # [Cin, 1]
        w_taps = [dw[:, k:k + 1] for k in range(9)]

        for b in range(bN):       # small static unroll: bN samples per grid step
            xf = x_ref[b]                                     # [Cin, HW]
            # Raw input -> bottom half of the fused-matmul activation slab.
            act_ref[Cin:, b * HW:(b + 1) * HW] = xf

            # Column-shifted neighbours via XLU lane rotation (col masks applied once).
            c_l = jnp.where(m_left, pltpu.roll(xf, 1, axis=1), 0.0)        # col j-1
            c_r = jnp.where(m_right, pltpu.roll(xf, HW - 1, axis=1), 0.0)  # col j+1

            # Per-row partial sums (3 independent chains instead of one 9-deep chain).
            t0 = c_l * w_taps[0] + xf * w_taps[1] + c_r * w_taps[2]
            t1 = c_l * w_taps[3] + xf * w_taps[4] + c_r * w_taps[5]
            t2 = c_l * w_taps[6] + xf * w_taps[7] + c_r * w_taps[8]

            acc = (jnp.where(m_top, pltpu.roll(t0, W, axis=1), 0.0)
                   + t1
                   + jnp.where(m_bot, pltpu.roll(t2, HW - W, axis=1), 0.0))

            # BN bias + ReLU (scale folded into dw); stash into top half of slab.
            act_ref[:Cin, b * HW:(b + 1) * HW] = jnp.maximum(acc + b1, 0.0)

        # ---- fused pointwise 1x1 + shortcut 1x1 : one MXU matmul over all samples ----
        mm = jnp.dot(w_ref[...], act_ref[...],
                     preferred_element_type=jnp.float32)       # [2*Cout, bN*HW]

        # epilogue: relu(pw + b2) * s3  +  shortcut*s3  + (b3 [+ s3*sc_b])  -> relu
        main = jnp.maximum(mm[:Cout, :] + b2_ref[...], 0.0) * s3_ref[...]
        res = jnp.maximum(main + mm[Cout:, :] + b3_ref[...], 0.0)
        for b in range(bN):
            o_ref[b] = res[:, b * HW:(b + 1) * HW].astype(o_ref.dtype)  # lane-dense store

    return kernel


# ---------------------------------------------------------------------------
# stride > 1 fallback kernel (NHWC, wrapper-side pad).  Not exercised below.
# TODO(synk): the stride>1 path is a simple un-tuned fallback (sparse lanes);
#             it should get the same channel-major lane-dense treatment.
# ---------------------------------------------------------------------------
def _make_kernel_strided(stride, Wp, Ho, Wo, Cin, Cout):
    def kernel(xp_ref, dw_ref, b1_ref, pw_ref, b2_ref, scw_ref, s3_ref, b3_ref, o_ref):
        xp = xp_ref[0]                                   # [Hp, Wp, Cin] (padded)
        dw = dw_ref[...]                                 # [3, 3, Cin]   (s1 folded)
        acc = jnp.zeros((Ho, Wo, Cin), jnp.float32)
        for kh in range(3):
            rows = lax.slice(xp, (kh, 0, 0),
                             (kh + (Ho - 1) * stride + 1, Wp, Cin),
                             (stride, 1, 1))             # [Ho, Wp, Cin]
            for kw in range(3):
                patch = lax.slice(rows, (0, kw, 0),
                                  (Ho, kw + (Wo - 1) * stride + 1, Cin),
                                  (1, stride, 1))        # [Ho, Wo, Cin]
                acc = acc + patch * dw[kh, kw]
        y = jnp.maximum(acc + b1_ref[0], 0.0).reshape(Ho * Wo, Cin)
        y = jnp.maximum(jnp.dot(y, pw_ref[...], preferred_element_type=jnp.float32)
                        + b2_ref[0], 0.0)                # [M, Cout]
        x_c = lax.slice(xp, (1, 1, 0),
                        (1 + (Ho - 1) * stride + 1, 1 + (Wo - 1) * stride + 1, Cin),
                        (stride, stride, 1)).reshape(Ho * Wo, Cin)
        res = jnp.dot(x_c, scw_ref[...], preferred_element_type=jnp.float32)
        out = jnp.maximum(y * s3_ref[0] + res + b3_ref[0], 0.0)
        o_ref[...] = out.reshape(1, Ho, Wo, Cout).astype(o_ref.dtype)

    return kernel


# ---------------------------------------------------------------------------
# wrappers
# ---------------------------------------------------------------------------
def _fold_bn(g, b, m, v, eps=1e-5):
    s = (g / jnp.sqrt(v + eps)).astype(jnp.float32)
    return s, (b - m * s).astype(jnp.float32)


def _whole(a):
    nd = a.ndim
    return pl.BlockSpec(a.shape, lambda n, _nd=nd: (0,) * _nd)


def _pick_bn(N, Cin, Cout, HW):
    """Samples per grid step: amortize per-step overhead + widen the MXU matmul,
    while keeping >=2 grid steps (feed both v7x TensorCores) and a small VMEM
    footprint (well under v7x's 64 MiB / 32 MiB scoped default)."""
    budget = 8 * 1024 * 1024
    best = 1
    for bn in range(1, min(N, 16) + 1):
        if N % bn:
            continue
        if N >= 2 and (N // bn) < 2:
            continue
        # double-buffered in/out blocks + act scratch + depthwise temporaries (f32)
        need = 4 * bn * HW * (2 * Cin + 2 * Cout + 2 * Cin + 6 * Cin)
        if need <= budget:
            best = bn
    return best


def _forward_s1(x_nchw, params, folded):
    s1, b1, s2, b2, s3, b3 = folded
    N, Cin, H, W = x_nchw.shape
    Cout = params['pw_w'].shape[1]
    has_shortcut = (Cin != Cout)
    HW = H * W

    # Free metadata reshape: NCHW -> [N, Cin, H*W]  (no transpose, no pad).
    x_flat = x_nchw.reshape(N, Cin, HW).astype(jnp.float32)

    # Fold BN scales into the conv weights.
    dw_f = (params['dw_w'].astype(jnp.float32) * s1).reshape(9, Cin).T       # (Cin, 9)
    pw_t = (params['pw_w'].astype(jnp.float32) * s2[None, :]).T              # (Cout, Cin)
    if has_shortcut:
        sc_t = (params['sc_w'].astype(jnp.float32) * s3[None, :]).T          # (Cout, Cin)
        b3c = b3 + s3 * params['sc_b'].astype(jnp.float32)
    else:
        # identity shortcut (only valid when Cin == Cout): express as diag(s3)
        sc_t = jnp.diag(s3)
        b3c = b3
    zeros = jnp.zeros((Cout, Cin), jnp.float32)
    w_all = jnp.concatenate(
        [jnp.concatenate([pw_t, zeros], axis=1),
         jnp.concatenate([zeros, sc_t], axis=1)], axis=0)                    # (2*Cout, 2*Cin)

    b1c = b1.reshape(Cin, 1)
    b2c = b2.reshape(Cout, 1)
    s3c = s3.reshape(Cout, 1)
    b3c = b3c.reshape(Cout, 1)

    bN = _pick_bn(N, Cin, Cout, HW)
    grid = (N // bN,)

    out_flat = pl.pallas_call(
        _make_kernel_s1(H, W, Cin, Cout, bN),
        out_shape=jax.ShapeDtypeStruct((N, Cout, HW), jnp.float32),
        grid=grid,
        in_specs=[pl.BlockSpec((bN, Cin, HW), lambda n: (n, 0, 0)),
                  _whole(dw_f), _whole(b1c), _whole(w_all),
                  _whole(b2c), _whole(s3c), _whole(b3c)],
        out_specs=pl.BlockSpec((bN, Cout, HW), lambda n: (n, 0, 0)),
        scratch_shapes=[pltpu.VMEM((2 * Cin, bN * HW), jnp.float32)],
        compiler_params=pltpu.CompilerParams(
            dimension_semantics=("parallel",),
            vmem_limit_bytes=48 * 1024 * 1024),
    )(x_flat, dw_f, b1c, w_all, b2c, s3c, b3c)

    # Free metadata reshape back to NCHW.
    return out_flat.reshape(N, Cout, H, W)


def _forward_strided(x_nchw, params, stride, folded):
    s1, b1, s2, b2, s3, b3 = folded
    N, Cin, H, W = x_nchw.shape
    Cout = params['pw_w'].shape[1]
    has_shortcut = (Cin != Cout)

    x = jnp.transpose(x_nchw, (0, 2, 3, 1)).astype(jnp.float32)
    xp = jnp.pad(x, ((0, 0), (1, 1), (1, 1), (0, 0)))
    Hp, Wp = H + 2, W + 2
    Ho = (H - 1) // stride + 1
    Wo = (W - 1) // stride + 1

    dw_f = params['dw_w'].astype(jnp.float32) * s1                   # (3,3,Cin)
    pw_f = params['pw_w'].astype(jnp.float32) * s2[None, :]          # (Cin,Cout)
    if has_shortcut:
        sc_f = params['sc_w'].astype(jnp.float32) * s3[None, :]
        b3c = b3 + s3 * params['sc_b'].astype(jnp.float32)
    else:
        sc_f = jnp.diag(s3)
        b3c = b3
    b1r, b2r = b1.reshape(1, -1), b2.reshape(1, -1)
    s3r, b3r = s3.reshape(1, -1), b3c.reshape(1, -1)

    kernel = _make_kernel_strided(stride, Wp, Ho, Wo, Cin, Cout)
    out_nhwc = pl.pallas_call(
        kernel,
        out_shape=jax.ShapeDtypeStruct((N, Ho, Wo, Cout), jnp.float32),
        grid=(N,),
        in_specs=[pl.BlockSpec((1, Hp, Wp, Cin), lambda n: (n, 0, 0, 0)),
                  _whole(dw_f), _whole(b1r), _whole(pw_f), _whole(b2r),
                  _whole(sc_f), _whole(s3r), _whole(b3r)],
        out_specs=pl.BlockSpec((1, Ho, Wo, Cout), lambda n: (n, 0, 0, 0)),
        compiler_params=pltpu.CompilerParams(dimension_semantics=("parallel",)),
    )(xp, dw_f, b1r, pw_f, b2r, sc_f, s3r, b3r)
    return jnp.transpose(out_nhwc, (0, 3, 1, 2))


def res_dw_forward(x_nchw, params, stride):
    """x_nchw: [N, Cin, H, W] -> [N, Cout, Ho, Wo] (matches PyTorch NCHW shapes)."""
    folded = (*_fold_bn(params['bn_dw_g'], params['bn_dw_b'],
                        params['bn_dw_m'], params['bn_dw_v']),
              *_fold_bn(params['bn_pw_g'], params['bn_pw_b'],
                        params['bn_pw_m'], params['bn_pw_v']),
              *_fold_bn(params['bn1_g'], params['bn1_b'],
                        params['bn1_m'], params['bn1_v']))
    if stride == 1:
        return _forward_s1(x_nchw, params, folded)
    return _forward_strided(x_nchw, params, stride, folded)


# ---------------------------------------------------------------------------
# pure-JAX reference (eval-mode BatchNorm), for correctness checking
# ---------------------------------------------------------------------------
def reference(x_nchw, params, stride):
    N, Cin, H, W = x_nchw.shape
    Cout = params['pw_w'].shape[1]
    eps = 1e-5
    dn = ('NHWC', 'HWIO', 'NHWC')
    x = jnp.transpose(x_nchw, (0, 2, 3, 1)).astype(jnp.float32)

    def bn(y, g, b, m, v):
        return (y - m) / jnp.sqrt(v + eps) * g + b

    dw_w = params['dw_w'].reshape(3, 3, 1, Cin)
    y = lax.conv_general_dilated(x, dw_w, (stride, stride), [(1, 1), (1, 1)],
                                 dimension_numbers=dn, feature_group_count=Cin)
    y = jnp.maximum(bn(y, params['bn_dw_g'], params['bn_dw_b'],
                       params['bn_dw_m'], params['bn_dw_v']), 0.0)
    pw_w = params['pw_w'].reshape(1, 1, Cin, Cout)
    y = lax.conv_general_dilated(y, pw_w, (1, 1), [(0, 0), (0, 0)], dimension_numbers=dn)
    y = jnp.maximum(bn(y, params['bn_pw_g'], params['bn_pw_b'],
                       params['bn_pw_m'], params['bn_pw_v']), 0.0)
    if Cin != Cout:
        sc_w = params['sc_w'].reshape(1, 1, Cin, Cout)
        res = lax.conv_general_dilated(x, sc_w, (stride, stride), [(0, 0), (0, 0)],
                                       dimension_numbers=dn) + params['sc_b']
    else:
        res = x[:, ::stride, ::stride, :]
    y = res + y
    y = bn(y, params['bn1_g'], params['bn1_b'], params['bn1_m'], params['bn1_v'])
    y = jnp.maximum(y, 0.0)
    return jnp.transpose(y, (0, 3, 1, 2))


def init_params(key, Cin, Cout):
    ks = jax.random.split(key, 16)
    p = {
        'dw_w': 0.2 * jax.random.normal(ks[0], (3, 3, Cin), jnp.float32),
        'pw_w': 0.2 * jax.random.normal(ks[1], (Cin, Cout), jnp.float32),
        'sc_w': 0.2 * jax.random.normal(ks[2], (Cin, Cout), jnp.float32),
        'sc_b': 0.1 * jax.random.normal(ks[3], (Cout,), jnp.float32),
    }

    def bn(kg, kb, km, kv, C):
        return (1.0 + 0.1 * jax.random.normal(kg, (C,), jnp.float32),
                0.1 * jax.random.normal(kb, (C,), jnp.float32),
                0.1 * jax.random.normal(km, (C,), jnp.float32),
                jax.random.uniform(kv, (C,), jnp.float32, 0.5, 1.5))

    p['bn_dw_g'], p['bn_dw_b'], p['bn_dw_m'], p['bn_dw_v'] = bn(ks[4], ks[5], ks[6], ks[7], Cin)
    p['bn_pw_g'], p['bn_pw_b'], p['bn_pw_m'], p['bn_pw_v'] = bn(ks[8], ks[9], ks[10], ks[11], Cout)
    p['bn1_g'], p['bn1_b'], p['bn1_m'], p['bn1_v'] = bn(ks[12], ks[13], ks[14], ks[15], Cout)
    return p


if __name__ == "__main__":
    key = jax.random.PRNGKey(0)
    kx1, kp1, kx2, kp2, kx3, kp3 = jax.random.split(key, 6)
    stride = 1

    # Config 1: projection shortcut (Cin != Cout), bN = 1 (N=2 keeps grid >= 2)
    N, Cin, Cout, H, W = 2, 8, 16, 16, 16
    x1 = jax.random.normal(kx1, (N, Cin, H, W), jnp.float32)
    p1 = init_params(kp1, Cin, Cout)
    out1 = jax.block_until_ready(res_dw_forward(x1, p1, stride))
    ref1 = reference(x1, p1, stride)
    assert out1.shape == ref1.shape, (out1.shape, ref1.shape)
    assert jnp.allclose(out1, ref1, rtol=1e-4, atol=1e-4), \
        f"max abs err {jnp.max(jnp.abs(out1 - ref1))}"

    # Config 2: identity shortcut (Cin == Cout)
    x2 = jax.random.normal(kx2, (N, 16, H, W), jnp.float32)
    p2 = init_params(kp2, 16, 16)
    out2 = jax.block_until_ready(res_dw_forward(x2, p2, stride))
    ref2 = reference(x2, p2, stride)
    assert out2.shape == ref2.shape, (out2.shape, ref2.shape)
    assert jnp.allclose(out2, ref2, rtol=1e-4, atol=1e-4), \
        f"max abs err {jnp.max(jnp.abs(out2 - ref2))}"

    # Config 3: larger batch -> exercises bN = 2 samples per grid step (grid = 2)
    x3 = jax.random.normal(kx3, (4, 16, H, W), jnp.float32)
    p3 = init_params(kp3, 16, 32)
    out3 = jax.block_until_ready(res_dw_forward(x3, p3, stride))
    ref3 = reference(x3, p3, stride)
    assert out3.shape == ref3.shape, (out3.shape, ref3.shape)
    assert jnp.allclose(out3, ref3, rtol=1e-4, atol=1e-4), \
        f"max abs err {jnp.max(jnp.abs(out3 - ref3))}"

    print("KERNEL_OK")
</pallas_src>

<mosaic_0001>
module attributes {stable_mosaic.version = 11 : i64} {
  func.func @kernel(%arg0: i32, %arg1: memref<1x8x256xf32, #tpu.memory_space<vmem>>, %arg2: memref<8x9xf32, #tpu.memory_space<vmem>>, %arg3: memref<8x1xf32, #tpu.memory_space<vmem>>, %arg4: memref<32x16xf32, #tpu.memory_space<vmem>>, %arg5: memref<16x1xf32, #tpu.memory_space<vmem>>, %arg6: memref<16x1xf32, #tpu.memory_space<vmem>>, %arg7: memref<16x1xf32, #tpu.memory_space<vmem>>, %arg8: memref<1x16x256xf32, #tpu.memory_space<vmem>>, %arg9: memref<16x256xf32, #tpu.memory_space<vmem>>) attributes {dimension_semantics = [#tpu.dimension_semantics<parallel>], iteration_bounds = array<i64: 2>, scalar_prefetch = 0 : i64, scratch_operands = 1 : i64, tpu.core_type = #tpu.core_type<tc>, window_params = [{transform_indices = @transform_0, window_bounds = array<i64: 1, 8, 256>}, {pipeline_mode = #tpu.pipeline_mode<synchronous>, transform_indices = @transform_1, window_bounds = array<i64: 8, 9>}, {pipeline_mode = #tpu.pipeline_mode<synchronous>, transform_indices = @transform_2, window_bounds = array<i64: 8, 1>}, {pipeline_mode = #tpu.pipeline_mode<synchronous>, transform_indices = @transform_3, window_bounds = array<i64: 32, 16>}, {pipeline_mode = #tpu.pipeline_mode<synchronous>, transform_indices = @transform_4, window_bounds = array<i64: 16, 1>}, {pipeline_mode = #tpu.pipeline_mode<synchronous>, transform_indices = @transform_5, window_bounds = array<i64: 16, 1>}, {pipeline_mode = #tpu.pipeline_mode<synchronous>, transform_indices = @transform_6, window_bounds = array<i64: 16, 1>}, {transform_indices = @transform_7, window_bounds = array<i64: 1, 16, 256>}]} {
    %0 = tpu.iota {dimensions = array<i32: 1>} : vector<1x256xi32>
    %c15_i32 = arith.constant 15 : i32
    %1 = vector.broadcast %c15_i32 : i32 to vector<1x256xi32>
    %2 = arith.andi %0, %1 : vector<1x256xi32>
    %c16_i32 = arith.constant 16 : i32
    %3 = vector.broadcast %c16_i32 : i32 to vector<1x256xi32>
    %4 = arith.cmpi sge, %0, %3 : vector<1x256xi32>
    %c240_i32 = arith.constant 240 : i32
    %5 = vector.broadcast %c240_i32 : i32 to vector<1x256xi32>
    %6 = arith.cmpi slt, %0, %5 : vector<1x256xi32>
    %c1_i32 = arith.constant 1 : i32
    %7 = vector.broadcast %c1_i32 : i32 to vector<1x256xi32>
    %8 = arith.cmpi sge, %2, %7 : vector<1x256xi32>
    %c14_i32 = arith.constant 14 : i32
    %9 = vector.broadcast %c14_i32 : i32 to vector<1x256xi32>
    %10 = arith.cmpi sle, %2, %9 : vector<1x256xi32>
    %c0 = arith.constant 0 : index
    %c0_0 = arith.constant 0 : index
    %11 = vector.load %arg2[%c0, %c0_0] : memref<8x9xf32, #tpu.memory_space<vmem>>, vector<8x9xf32>
    %c0_1 = arith.constant 0 : index
    %c0_2 = arith.constant 0 : index
    %12 = vector.load %arg3[%c0_1, %c0_2] : memref<8x1xf32, #tpu.memory_space<vmem>>, vector<8x1xf32>
    %13 = vector.extract_strided_slice %11 {offsets = [0, 0], sizes = [8, 1], strides = [1, 1]} : vector<8x9xf32> to vector<8x1xf32>
    %14 = vector.extract_strided_slice %11 {offsets = [0, 1], sizes = [8, 1], strides = [1, 1]} : vector<8x9xf32> to vector<8x1xf32>
    %15 = vector.extract_strided_slice %11 {offsets = [0, 2], sizes = [8, 1], strides = [1, 1]} : vector<8x9xf32> to vector<8x1xf32>
    %16 = vector.extract_strided_slice %11 {offsets = [0, 3], sizes = [8, 1], strides = [1, 1]} : vector<8x9xf32> to vector<8x1xf32>
    %17 = vector.extract_strided_slice %11 {offsets = [0, 4], sizes = [8, 1], strides = [1, 1]} : vector<8x9xf32> to vector<8x1xf32>
    %18 = vector.extract_strided_slice %11 {offsets = [0, 5], sizes = [8, 1], strides = [1, 1]} : vector<8x9xf32> to vector<8x1xf32>
    %19 = vector.extract_strided_slice %11 {offsets = [0, 6], sizes = [8, 1], strides = [1, 1]} : vector<8x9xf32> to vector<8x1xf32>
    %20 = vector.extract_strided_slice %11 {offsets = [0, 7], sizes = [8, 1], strides = [1, 1]} : vector<8x9xf32> to vector<8x1xf32>
    %21 = vector.extract_strided_slice %11 {offsets = [0, 8], sizes = [8, 1], strides = [1, 1]} : vector<8x9xf32> to vector<8x1xf32>
    %c0_3 = arith.constant 0 : index
    %c0_4 = arith.constant 0 : index
    %c0_5 = arith.constant 0 : index
    %22 = vector.load %arg1[%c0_3, %c0_4, %c0_5] : memref<1x8x256xf32, #tpu.memory_space<vmem>>, vector<1x8x256xf32>
    %23 = vector.shape_cast %22 : vector<1x8x256xf32> to vector<8x256xf32>
    %c8 = arith.constant 8 : index
    %c0_6 = arith.constant 0 : index
    %24 = vector.load %arg9[%c8, %c0_6] : memref<16x256xf32, #tpu.memory_space<vmem>>, vector<8x256xf32>
    tpu.vector_store %arg9[%c8, %c0_6], %23 {strides = array<i32>} : memref<16x256xf32, #tpu.memory_space<vmem>>, vector<8x256xf32>,
    %c1_i32_7 = arith.constant 1 : i32
    %25 = tpu.dynamic_rotate %23 by %c1_i32_7 dim 1 : vector<8x256xf32>, i32 -> vector<8x256xf32>
    %cst = arith.constant 0.000000e+00 : f32
    %26 = vector.shape_cast %8 : vector<1x256xi1> to vector<1x256xi1>
    %27 = vector.broadcast %26 : vector<1x256xi1> to vector<8x256xi1>
    %28 = vector.broadcast %cst : f32 to vector<8x256xf32>
    %29 = arith.select %27, %25, %28 : vector<8x256xi1>, vector<8x256xf32>
    %c255_i32 = arith.constant 255 : i32
    %30 = tpu.dynamic_rotate %23 by %c255_i32 dim 1 : vector<8x256xf32>, i32 -> vector<8x256xf32>
    %cst_8 = arith.constant 0.000000e+00 : f32
    %31 = vector.shape_cast %10 : vector<1x256xi1> to vector<1x256xi1>
    %32 = vector.broadcast %31 : vector<1x256xi1> to vector<8x256xi1>
    %33 = vector.broadcast %cst_8 : f32 to vector<8x256xf32>
    %34 = arith.select %32, %30, %33 : vector<8x256xi1>, vector<8x256xf32>
    %35 = vector.broadcast %13 : vector<8x1xf32> to vector<8x256xf32>
    %36 = arith.mulf %29, %35 : vector<8x256xf32>
    %37 = vector.broadcast %14 : vector<8x1xf32> to vector<8x256xf32>
    %38 = arith.mulf %23, %37 : vector<8x256xf32>
    %39 = arith.addf %36, %38 : vector<8x256xf32>
    %40 = vector.broadcast %15 : vector<8x1xf32> to vector<8x256xf32>
    %41 = arith.mulf %34, %40 : vector<8x256xf32>
    %42 = arith.addf %39, %41 : vector<8x256xf32>
    %43 = vector.broadcast %16 : vector<8x1xf32> to vector<8x256xf32>
    %44 = arith.mulf %29, %43 : vector<8x256xf32>
    %45 = vector.broadcast %17 : vector<8x1xf32> to vector<8x256xf32>
    %46 = arith.mulf %23, %45 : vector<8x256xf32>
    %47 = arith.addf %44, %46 : vector<8x256xf32>
    %48 = vector.broadcast %18 : vector<8x1xf32> to vector<8x256xf32>
    %49 = arith.mulf %34, %48 : vector<8x256xf32>
    %50 = arith.addf %47, %49 : vector<8x256xf32>
    %51 = vector.broadcast %19 : vector<8x1xf32> to vector<8x256xf32>
    %52 = arith.mulf %29, %51 : vector<8x256xf32>
    %53 = vector.broadcast %20 : vector<8x1xf32> to vector<8x256xf32>
    %54 = arith.mulf %23, %53 : vector<8x256xf32>
    %55 = arith.addf %52, %54 : vector<8x256xf32>
    %56 = vector.broadcast %21 : vector<8x1xf32> to vector<8x256xf32>
    %57 = arith.mulf %34, %56 : vector<8x256xf32>
    %58 = arith.addf %55, %57 : vector<8x256xf32>
    %c16_i32_9 = arith.constant 16 : i32
    %59 = tpu.dynamic_rotate %42 by %c16_i32_9 dim 1 : vector<8x256xf32>, i32 -> vector<8x256xf32>
    %cst_10 = arith.constant 0.000000e+00 : f32
    %60 = vector.shape_cast %4 : vector<1x256xi1> to vector<1x256xi1>
    %61 = vector.broadcast %60 : vector<1x256xi1> to vector<8x256xi1>
    %62 = vector.broadcast %cst_10 : f32 to vector<8x256xf32>
    %63 = arith.select %61, %59, %62 : vector<8x256xi1>, vector<8x256xf32>
    %64 = arith.addf %63, %50 : vector<8x256xf32>
    %c240_i32_11 = arith.constant 240 : i32
    %65 = tpu.dynamic_rotate %58 by %c240_i32_11 dim 1 : vector<8x256xf32>, i32 -> vector<8x256xf32>
    %cst_12 = arith.constant 0.000000e+00 : f32
    %66 = vector.shape_cast %6 : vector<1x256xi1> to vector<1x256xi1>
    %67 = vector.broadcast %66 : vector<1x256xi1> to vector<8x256xi1>
    %68 = vector.broadcast %cst_12 : f32 to vector<8x256xf32>
    %69 = arith.select %67, %65, %68 : vector<8x256xi1>, vector<8x256xf32>
    %70 = arith.addf %64, %69 : vector<8x256xf32>
    %71 = vector.broadcast %12 : vector<8x1xf32> to vector<8x256xf32>
    %72 = arith.addf %70, %71 : vector<8x256xf32>
    %cst_13 = arith.constant 0.000000e+00 : f32
    %73 = vector.broadcast %cst_13 : f32 to vector<8x256xf32>
    %74 = arith.maximumf %72, %73 : vector<8x256xf32>
    %c0_14 = arith.constant 0 : index
    %c0_15 = arith.constant 0 : index
    %75 = vector.load %arg9[%c0_14, %c0_15] : memref<16x256xf32, #tpu.memory_space<vmem>>, vector<8x256xf32>
    tpu.vector_store %arg9[%c0_14, %c0_15], %74 {strides = array<i32>} : memref<16x256xf32, #tpu.memory_space<vmem>>, vector<8x256xf32>,
    %c0_16 = arith.constant 0 : index
    %c0_17 = arith.constant 0 : index
    %76 = vector.load %arg4[%c0_16, %c0_17] : memref<32x16xf32, #tpu.memory_space<vmem>>, vector<32x16xf32>
    %c0_18 = arith.constant 0 : index
    %c0_19 = arith.constant 0 : index
    %77 = vector.load %arg9[%c0_18, %c0_19] : memref<16x256xf32, #tpu.memory_space<vmem>>, vector<16x256xf32>
    %cst_20 = arith.constant dense<0.000000e+00> : vector<32x256xf32>
    %78 = tpu.matmul %76, %77, %cst_20 {dimension_numbers = #tpu.dot_dimension_numbers<[1], [0], [0], [1], [0, 0, 1, 1], [], []>} : vector<32x16xf32>, vector<16x256xf32>, vector<32x256xf32> -> vector<32x256xf32>
    %79 = vector.extract_strided_slice %78 {offsets = [0, 0], sizes = [16, 256], strides = [1, 1]} : vector<32x256xf32> to vector<16x256xf32>
    %c0_21 = arith.constant 0 : index
    %c0_22 = arith.constant 0 : index
    %80 = vector.load %arg5[%c0_21, %c0_22] : memref<16x1xf32, #tpu.memory_space<vmem>>, vector<16x1xf32>
    %81 = vector.broadcast %80 : vector<16x1xf32> to vector<16x256xf32>
    %82 = arith.addf %79, %81 : vector<16x256xf32>
    %cst_23 = arith.constant 0.000000e+00 : f32
    %83 = vector.broadcast %cst_23 : f32 to vector<16x256xf32>
    %84 = arith.maximumf %82, %83 : vector<16x256xf32>
    %c0_24 = arith.constant 0 : index
    %c0_25 = arith.constant 0 : index
    %85 = vector.load %arg6[%c0_24, %c0_25] : memref<16x1xf32, #tpu.memory_space<vmem>>, vector<16x1xf32>
    %86 = vector.broadcast %85 : vector<16x1xf32> to vector<16x256xf32>
    %87 = arith.mulf %84, %86 : vector<16x256xf32>
    %88 = vector.extract_strided_slice %78 {offsets = [16, 0], sizes = [16, 256], strides = [1, 1]} : vector<32x256xf32> to vector<16x256xf32>
    %89 = arith.addf %87, %88 : vector<16x256xf32>
    %c0_26 = arith.constant 0 : index
    %c0_27 = arith.constant 0 : index
    %90 = vector.load %arg7[%c0_26, %c0_27] : memref<16x1xf32, #tpu.memory_space<vmem>>, vector<16x1xf32>
    %91 = vector.broadcast %90 : vector<16x1xf32> to vector<16x256xf32>
    %92 = arith.addf %89, %91 : vector<16x256xf32>
    %cst_28 = arith.constant 0.000000e+00 : f32
    %93 = vector.broadcast %cst_28 : f32 to vector<16x256xf32>
    %94 = arith.maximumf %92, %93 : vector<16x256xf32>
    %c0_29 = arith.constant 0 : index
    %c0_30 = arith.constant 0 : index
    %c0_31 = arith.constant 0 : index
    %95 = vector.load %arg8[%c0_29, %c0_30, %c0_31] : memref<1x16x256xf32, #tpu.memory_space<vmem>>, vector<1x16x256xf32>
    %96 = vector.shape_cast %95 : vector<1x16x256xf32> to vector<16x256xf32>
    %97 = vector.shape_cast %94 : vector<16x256xf32> to vector<1x16x256xf32>
    tpu.vector_store %arg8[%c0_29, %c0_30, %c0_31], %97 {strides = array<i32>} : memref<1x16x256xf32, #tpu.memory_space<vmem>>, vector<1x16x256xf32>,
    return
  }
  func.func @transform_0(%arg0: i32) -> (i32, i32, i32) {
    %c0_i32 = arith.constant 0 : i32
    %c0_i32_0 = arith.constant 0 : i32
    %c0_i32_1 = arith.constant 0 : i32
    return %arg0, %c0_i32, %c0_i32_0 : i32, i32, i32
  }
  func.func @transform_1(%arg0: i32) -> (i32, i32) {
    %c0_i32 = arith.constant 0 : i32
    %c0_i32_0 = arith.constant 0 : i32
    %c0_i32_1 = arith.constant 0 : i32
    return %c0_i32, %c0_i32_0 : i32, i32
  }
  func.func @transform_2(%arg0: i32) -> (i32, i32) {
    %c0_i32 = arith.constant 0 : i32
    %c0_i32_0 = arith.constant 0 : i32
    %c0_i32_1 = arith.constant 0 : i32
    return %c0_i32, %c0_i32_0 : i32, i32
  }
  func.func @transform_3(%arg0: i32) -> (i32, i32) {
    %c0_i32 = arith.constant 0 : i32
    %c0_i32_0 = arith.constant 0 : i32
    %c0_i32_1 = arith.constant 0 : i32
    return %c0_i32, %c0_i32_0 : i32, i32
  }
  func.func @transform_4(%arg0: i32) -> (i32, i32) {
    %c0_i32 = arith.constant 0 : i32
    %c0_i32_0 = arith.constant 0 : i32
    %c0_i32_1 = arith.constant 0 : i32
    return %c0_i32, %c0_i32_0 : i32, i32
  }
  func.func @transform_5(%arg0: i32) -> (i32, i32) {
    %c0_i32 = arith.constant 0 : i32
    %c0_i32_0 = arith.constant 0 : i32
    %c0_i32_1 = arith.constant 0 : i32
    return %c0_i32, %c0_i32_0 : i32, i32
  }
  func.func @transform_6(%arg0: i32) -> (i32, i32) {
    %c0_i32 = arith.constant 0 : i32
    %c0_i32_0 = arith.constant 0 : i32
    %c0_i32_1 = arith.constant 0 : i32
    return %c0_i32, %c0_i32_0 : i32, i32
  }
  func.func @transform_7(%arg0: i32) -> (i32, i32, i32) {
    %c0_i32 = arith.constant 0 : i32
    %c0_i32_0 = arith.constant 0 : i32
    %c0_i32_1 = arith.constant 0 : i32
    return %arg0, %c0_i32, %c0_i32_0 : i32, i32, i32
  }
}

</mosaic_0001>

<llo_original>
// kernel: tpu_custom_call.1
$region0: #{tpu_custom_call.1}
  #allocation0 [shape = 'u32[]', space=smem, size = 0x4, offset = 0x4, fixed_abs, tag = 'smem constant byte address 0x4 - core index']
  #allocation1 [shape = 'u32[72,128]{1,0:T(1,128)}', space=vmem, size = 0x9000, scoped, tag = 'internal scratch']
  #allocation2 [shape = 'f32[16,256]{1,0:T(8,128)}', space=vmem, size = 0x4000, scoped, tag = 'scratch operand']
  %s0 = inlined_call_operand.vmem [shape: f32[2,8,256], index: 0, kind: input, shape index: {}]
  %s1 = inlined_call_operand.vmem [shape: f32[8,9], index: 1, kind: input, shape index: {}]
  %s2 = inlined_call_operand.vmem [shape: f32[8,1], index: 2, kind: input, shape index: {}]
  %s3 = inlined_call_operand.vmem [shape: f32[32,16], index: 3, kind: input, shape index: {}]
  %s4 = inlined_call_operand.vmem [shape: f32[16,1], index: 4, kind: input, shape index: {}]
  %s5 = inlined_call_operand.vmem [shape: f32[16,1], index: 5, kind: input, shape index: {}]
  %s6 = inlined_call_operand.vmem [shape: f32[16,1], index: 6, kind: input, shape index: {}]
  %s7 = inlined_call_operand.hbm [shape: f32[2,16,256], index: 7, kind: output, shape index: {}]
  %s8 = sld [smem:[#allocation0]]
  $region61: #{tpu_custom_call.1} parent=0
    _
  %s10 = ssub.s32 1, %s8
  %s11 = scalar_select 0, %s10, %s8
  $region1: #{tpu_custom_call.1} parent=0
    #allocation3 [shape = 'u8[32768]{0}', space=vmem, size = 0x8000, scoped, tag = 'output window, operand 0']
    #allocation4 [shape = 's32[2]{0}', space=sflag, size = 0x8, scoped, tag = 'scoped memory for tpu_custom_call.1']
    %12 = vsyncpa [#allocation4], 0
    %s13 = scalar_lea.sflag [#allocation4], 1
    %14 = vsyncpa %s13, 0
    loop: start=0, step=1, limit=4
    $region2: #{tpu_custom_call.1} parent=1 // loop_pre_header
      _
    $region3: #{tpu_custom_call.1} parent=1 // loop_header
      %s16 = sphi 0, %s20
      %p17 = scmp.ge.s32.totalorder %s16, 4
      %s26 = sphi 0, %s28
      %s29 = sphi 0, %s26
      %s30 = sphi 0, %s29
      %s46 = sphi 0, %s30
      %s50 = sphi 0, %s50
      %s52 = sphi 0, %s50
      %s53 = sphi 0, %s52
      %s67 = sphi 0, %s53
      %s71 = sphi 0, %s71
      %s73 = sphi 0, %s71
      %s74 = sphi 0, %s73
      %s88 = sphi 0, %s74
      %s92 = sphi 0, %s92
      %s94 = sphi 0, %s92
      %s95 = sphi 0, %s94
      %s109 = sphi 0, %s95
      %s113 = sphi 0, %s113
      %s115 = sphi 0, %s113
      %s116 = sphi 0, %s115
      %s130 = sphi 0, %s116
      %s134 = sphi 0, %s134
      %s136 = sphi 0, %s134
      %s137 = sphi 0, %s136
      %s151 = sphi 0, %s137
      %s155 = sphi 0, %s155
      %s157 = sphi 0, %s155
      %s158 = sphi 0, %s157
      %s172 = sphi 0, %s158
      %s178 = sphi 0, %s180
      %s181 = sphi 0, %s178
      %s182 = sphi 0, %s181
      %s198 = sphi 0, %s182
    $region4: #{tpu_custom_call.1} parent=1 // loop_header_branch
      %19 = sbr.rel (%p17) target = $region8
    $region5: #{tpu_custom_call.1} parent=1 // loop_body
      %s21 = ssub.s32 %s16, 1
      %s22 = ssub.s32 %s16, 2
      %s23 = sadd.s32 %s16, 1
      %s24 = ssub.s32 %s16, %s23
      %p25 = scmp.eq.s32.totalorder %s24, 0
      %s27 = sadd.s32 %s26, 1
      %s28 = scalar_select %p25, %s26, %s27
      %p31 = pneg %p25
      %p32 = scmp.eq.s32.totalorder %s16, 1
      %p33 = por %p31, %p32
      %p34 = scmp.ne.s32.totalorder %s26, %s29
      %p35 = scmp.eq.s32.totalorder %s16, 0
      %p36 = por %p34, %p35
      %p37 = scmp.ne.s32.totalorder %s26, %s29
      %p38 = scmp.eq.s32.totalorder %s21, 1
      %p39 = por %p37, %p38
      %p40 = scmp.ne.s32.totalorder %s29, %s30
      %p41 = scmp.eq.s32.totalorder %s21, 0
      %p42 = por %p40, %p41
      %p43 = scmp.ne.s32.totalorder %s29, %s30
      %p44 = scmp.eq.s32.totalorder %s22, 1
      %p45 = por %p43, %p44
      %p47 = scmp.ne.s32.totalorder %s30, %s46
      %p48 = scmp.eq.s32.totalorder %s22, 0
      %p49 = por %p47, %p48
      %s51 = sadd.s32 %s50, 1
      %p54 = scmp.eq.s32.totalorder %s16, 1
      %p55 = scmp.ne.s32.totalorder %s50, %s52
      %p56 = scmp.eq.s32.totalorder %s16, 0
      %p57 = por %p55, %p56
      %p58 = scmp.ne.s32.totalorder %s50, %s52
      %p59 = scmp.eq.s32.totalorder %s21, 1
      %p60 = por %p58, %p59
      %p61 = scmp.ne.s32.totalorder %s52, %s53
      %p62 = scmp.eq.s32.totalorder %s21, 0
      %p63 = por %p61, %p62
      %p64 = scmp.ne.s32.totalorder %s52, %s53
      %p65 = scmp.eq.s32.totalorder %s22, 1
      %p66 = por %p64, %p65
      %p68 = scmp.ne.s32.totalorder %s53, %s67
      %p69 = scmp.eq.s32.totalorder %s22, 0
      %p70 = por %p68, %p69
      %s72 = sadd.s32 %s71, 1
      %p75 = scmp.eq.s32.totalorder %s16, 1
      %p76 = scmp.ne.s32.totalorder %s71, %s73
      %p77 = scmp.eq.s32.totalorder %s16, 0
      %p78 = por %p76, %p77
      %p79 = scmp.ne.s32.totalorder %s71, %s73
      %p80 = scmp.eq.s32.totalorder %s21, 1
      %p81 = por %p79, %p80
      %p82 = scmp.ne.s32.totalorder %s73, %s74
      %p83 = scmp.eq.s32.totalorder %s21, 0
      %p84 = por %p82, %p83
      %p85 = scmp.ne.s32.totalorder %s73, %s74
      %p86 = scmp.eq.s32.totalorder %s22, 1
      %p87 = por %p85, %p86
      %p89 = scmp.ne.s32.totalorder %s74, %s88
      %p90 = scmp.eq.s32.totalorder %s22, 0
      %p91 = por %p89, %p90
      %s93 = sadd.s32 %s92, 1
      %p96 = scmp.eq.s32.totalorder %s16, 1
      %p97 = scmp.ne.s32.totalorder %s92, %s94
      %p98 = scmp.eq.s32.totalorder %s16, 0
      %p99 = por %p97, %p98
      %p100 = scmp.ne.s32.totalorder %s92, %s94
      %p101 = scmp.eq.s32.totalorder %s21, 1
      %p102 = por %p100, %p101
      %p103 = scmp.ne.s32.totalorder %s94, %s95
      %p104 = scmp.eq.s32.totalorder %s21, 0
      %p105 = por %p103, %p104
      %p106 = scmp.ne.s32.totalorder %s94, %s95
      %p107 = scmp.eq.s32.totalorder %s22, 1
      %p108 = por %p106, %p107
      %p110 = scmp.ne.s32.totalorder %s95, %s109
      %p111 = scmp.eq.s32.totalorder %s22, 0
      %p112 = por %p110, %p111
      %s114 = sadd.s32 %s113, 1
      %p117 = scmp.eq.s32.totalorder %s16, 1
      %p118 = scmp.ne.s32.totalorder %s113, %s115
      %p119 = scmp.eq.s32.totalorder %s16, 0
      %p120 = por %p118, %p119
      %p121 = scmp.ne.s32.totalorder %s113, %s115
      %p122 = scmp.eq.s32.totalorder %s21, 1
      %p123 = por %p121, %p122
      %p124 = scmp.ne.s32.totalorder %s115, %s116
      %p125 = scmp.eq.s32.totalorder %s21, 0
      %p126 = por %p124, %p125
      %p127 = scmp.ne.s32.totalorder %s115, %s116
      %p128 = scmp.eq.s32.totalorder %s22, 1
      %p129 = por %p127, %p128
      %p131 = scmp.ne.s32.totalorder %s116, %s130
      %p132 = scmp.eq.s32.totalorder %s22, 0
      %p133 = por %p131, %p132
      %s135 = sadd.s32 %s134, 1
      %p138 = scmp.eq.s32.totalorder %s16, 1
      %p139 = scmp.ne.s32.totalorder %s134, %s136
      %p140 = scmp.eq.s32.totalorder %s16, 0
      %p141 = por %p139, %p140
      %p142 = scmp.ne.s32.totalorder %s134, %s136
      %p143 = scmp.eq.s32.totalorder %s21, 1
      %p144 = por %p142, %p143
      %p145 = scmp.ne.s32.totalorder %s136, %s137
      %p146 = scmp.eq.s32.totalorder %s21, 0
      %p147 = por %p145, %p146
      %p148 = scmp.ne.s32.totalorder %s136, %s137
      %p149 = scmp.eq.s32.totalorder %s22, 1
      %p150 = por %p148, %p149
      %p152 = scmp.ne.s32.totalorder %s137, %s151
      %p153 = scmp.eq.s32.totalorder %s22, 0
      %p154 = por %p152, %p153
      %s156 = sadd.s32 %s155, 1
      %p159 = scmp.eq.s32.totalorder %s16, 1
      %p160 = scmp.ne.s32.totalorder %s155, %s157
      %p161 = scmp.eq.s32.totalorder %s16, 0
      %p162 = por %p160, %p161
      %p163 = scmp.ne.s32.totalorder %s155, %s157
      %p164 = scmp.eq.s32.totalorder %s21, 1
      %p165 = por %p163, %p164
      %p166 = scmp.ne.s32.totalorder %s157, %s158
      %p167 = scmp.eq.s32.totalorder %s21, 0
      %p168 = por %p166, %p167
      %p169 = scmp.ne.s32.totalorder %s157, %s158
      %p170 = scmp.eq.s32.totalorder %s22, 1
      %p171 = por %p169, %p170
      %p173 = scmp.ne.s32.totalorder %s158, %s172
      %p174 = scmp.eq.s32.totalorder %s22, 0
      %p175 = por %p173, %p174
      %s176 = ssub.s32 %s16, %s23
      %p177 = scmp.eq.s32.totalorder %s176, 0
      %s179 = sadd.s32 %s178, 1
      %s180 = scalar_select %p177, %s178, %s179
      %p183 = pneg %p177
      %p184 = scmp.eq.s32.totalorder %s16, 1
      %p185 = por %p183, %p184
      %p186 = scmp.ne.s32.totalorder %s178, %s181
      %p187 = scmp.eq.s32.totalorder %s16, 0
      %p188 = por %p186, %p187
      %p189 = scmp.ne.s32.totalorder %s178, %s181
      %p190 = scmp.eq.s32.totalorder %s21, 1
      %p191 = por %p189, %p190
      %p192 = scmp.ne.s32.totalorder %s181, %s182
      %p193 = scmp.eq.s32.totalorder %s21, 0
      %p194 = por %p192, %p193
      %p195 = scmp.ne.s32.totalorder %s181, %s182
      %p196 = scmp.eq.s32.totalorder %s22, 1
      %p197 = por %p195, %p196
      %p199 = scmp.ne.s32.totalorder %s182, %s198
      %p200 = scmp.eq.s32.totalorder %s22, 0
      %p201 = por %p199, %p200
      %p202 = scmp.le.s32.totalorder 1, %s16
      %p203 = scmp.lt.s32.totalorder %s16, 3
      %p204 = pnand %p202, %p203
      %p205 = pneg %p204
      // Predicated region
      $region9: #{tpu_custom_call.1} parent=5 // pred_check
        _
      $region10: #{tpu_custom_call.1} parent=5 // pred_check_branch
        %207 = sbr.rel (%p204) target = $region12
      $region11: #{tpu_custom_call.1} parent=5 // pred_region
        %s208 = ssub.s32 %s16, 1
        // Predicated region
        $region13: #{tpu_custom_call.1} parent=11 // pred_check
          %p209 = pneg %p63
        $region14: #{tpu_custom_call.1} parent=11 // pred_check_branch
          %211 = sbr.rel (%p209) target = $region16
        $region15: #{tpu_custom_call.1} parent=11 // pred_region
          _
        $region16: #{tpu_custom_call.1} parent=11 // pred_fallthru
          _
        // Predicated region
        $region17: #{tpu_custom_call.1} parent=11 // pred_check
          %p212 = pneg %p84
        $region18: #{tpu_custom_call.1} parent=11 // pred_check_branch
          %214 = sbr.rel (%p212) target = $region20
        $region19: #{tpu_custom_call.1} parent=11 // pred_region
          _
        $region20: #{tpu_custom_call.1} parent=11 // pred_fallthru
          _
        // Predicated region
        $region21: #{tpu_custom_call.1} parent=11 // pred_check
          %p215 = pneg %p105
        $region22: #{tpu_custom_call.1} parent=11 // pred_check_branch
          %217 = sbr.rel (%p215) target = $region24
        $region23: #{tpu_custom_call.1} parent=11 // pred_region
          _
        $region24: #{tpu_custom_call.1} parent=11 // pred_fallthru
          _
        // Predicated region
        $region25: #{tpu_custom_call.1} parent=11 // pred_check
          %p218 = pneg %p126
        $region26: #{tpu_custom_call.1} parent=11 // pred_check_branch
          %220 = sbr.rel (%p218) target = $region28
        $region27: #{tpu_custom_call.1} parent=11 // pred_region
          _
        $region28: #{tpu_custom_call.1} parent=11 // pred_fallthru
          _
        // Predicated region
        $region29: #{tpu_custom_call.1} parent=11 // pred_check
          %p221 = pneg %p147
        $region30: #{tpu_custom_call.1} parent=11 // pred_check_branch
          %223 = sbr.rel (%p221) target = $region32
        $region31: #{tpu_custom_call.1} parent=11 // pred_region
          _
        $region32: #{tpu_custom_call.1} parent=11 // pred_fallthru
          _
        // Predicated region
        $region33: #{tpu_custom_call.1} parent=11 // pred_check
          %p224 = pneg %p168
        $region34: #{tpu_custom_call.1} parent=11 // pred_check_branch
          %226 = sbr.rel (%p224) target = $region36
        $region35: #{tpu_custom_call.1} parent=11 // pred_region
          _
        $region36: #{tpu_custom_call.1} parent=11 // pred_fallthru
          _
      $region12: #{tpu_custom_call.1} parent=5 // pred_fallthru
        _
      %p227 = scmp.lt.s32.totalorder %s16, 2
      // Predicated region
      $region37: #{tpu_custom_call.1} parent=5 // pred_check
        %p228 = pneg %p227
      $region38: #{tpu_custom_call.1} parent=5 // pred_check_branch
        %230 = sbr.rel (%p228) target = $region40
      $region39: #{tpu_custom_call.1} parent=5 // pred_region
        // Predicated region
        $region41: #{tpu_custom_call.1} parent=39 // pred_check
          %p231 = pneg %p36
        $region42: #{tpu_custom_call.1} parent=39 // pred_check_branch
          %233 = sbr.rel (%p231) target = $region44
        $region43: #{tpu_custom_call.1} parent=39 // pred_region
          %p234 = scmp.lt.s32.totalorder %s16, 1
          %s235 = scalar_select %p234, %s16, 1
          %s236 = smul.addr %s235, 2
          %s237 = smul.addr %s236, 8
          %s238 = scalar_lea.vmem %s0, %s237
        $region44: #{tpu_custom_call.1} parent=39 // pred_fallthru
          _
      $region40: #{tpu_custom_call.1} parent=5 // pred_fallthru
        _
      %p239 = scmp.le.s32.totalorder 1, %s16
      %p240 = scmp.lt.s32.totalorder %s16, 3
      %p241 = pnand %p239, %p240
      %p242 = pneg %p241
      // Predicated region
      $region45: #{tpu_custom_call.1} parent=5 // pred_check
        _
      $region46: #{tpu_custom_call.1} parent=5 // pred_check_branch
        %244 = sbr.rel (%p241) target = $region48
      $region47: #{tpu_custom_call.1} parent=5 // pred_region
        %s245 = ssub.s32 %s16, 1
        %p246 = scmp.lt.s32.totalorder %s21, 1
        %s247 = scalar_select %p246, %s21, 1
        %s248 = smul.addr %s247, 2
        %s249 = smul.addr %s248, 8
        %s250 = scalar_lea.vmem %s0, %s249
        %p251 = pneg %p42
        %p252 = pneg %p39
        %p253 = pneg %p63
        %p254 = pneg %p60
        %p255 = pneg %p84
        %p256 = pneg %p81
        %p257 = pneg %p105
        %p258 = pneg %p102
        %p259 = pneg %p126
        %p260 = pneg %p123
        %p261 = pneg %p147
        %p262 = pneg %p144
        %p263 = pneg %p168
        %p264 = pneg %p165
        %p265 = pneg %p194
        %p266 = pneg %p191
        %s267 = sand.u32 %s181, 1
        %s268 = scalar_lea.sflag [#allocation4], %s267
        %s269 = sand.u32 %s181, 1
        %s270 = smul.addr %s269, 32
        %s271 = scalar_lea.vmem [#allocation3], %s270
        %p272 = scmp.lt.s32.totalorder %s21, 1
        %s273 = scalar_select %p272, %s21, 1
        %s274 = smul.addr %s273, 2
        %s275 = smul.addr %s274, 8
        %s276 = scalar_lea.vmem %s0, %s275
        %v277 = vlaneseq
        %v278 = vand.u32 %v277, 127
        %v279 = vadd.s32 %v278, 128
        %v280 = vand.u32 %v278, 15
        %v281 = vand.u32 %v279, 15
        %vm282 = vcmp.ge.s32.totalorder %v278, 16
        %vm283 = vcmp.ge.s32.totalorder %v279, 16
        %vm284 = vcmp.lt.s32.totalorder %v278, 240
        %vm285 = vcmp.lt.s32.totalorder %v279, 240
        %vm286 = vcmp.ge.s32.totalorder %v280, 1
        %vm287 = vcmp.ge.s32.totalorder %v281, 1
        %vm288 = vcmp.le.s32.totalorder %v280, 14
        %vm289 = vcmp.le.s32.totalorder %v281, 14
        %v290 = vld [vmem:[%s1] sm:$0xff]
        %v291 = vld [vmem:[%s2] sm:$0xff]
        %v292 = vld [vmem:[%s276] sm:$0xff]
        %v293 = vld [vmem:[%s276 + $0x8] sm:$0xff]
        %294 = vst [vmem:[#allocation2 + $0x10] sm:$0xff] %v292
        %295 = vst [vmem:[#allocation2 + $0x18] sm:$0xff] %v293
        %296 = vrot.lane.b32.xlu0 %v292, 1
        %v297 = vpop.permute.xlu0 %296
        %298 = vrot.lane.b32.xlu0 %v293, 1
        %v299 = vpop.permute.xlu0 %298
        %vm300 = vcmp.lt.s32.totalorder %v278, 1
        %v301 = vsel %vm300, %v297, %v299
        %v302 = vsel %vm300, %v299, %v297
        %v303 = vsel %vm286, 1, 0
        %v304 = vsel %vm287, 1, 0
        %vm305 = vcmp.eq.s32.totalorder %v303, 1
        %vm306 = vcmp.eq.s32.totalorder %v304, 1
        %v307 = vsel %vm305, %v302, 0.0
        %v308 = vsel %vm306, %v301, 0.0
        %309 = vrot.lane.b32.xlu0 %v292, 127
        %v310 = vpop.permute.xlu0 %309
        %311 = vrot.lane.b32.xlu0 %v293, 127
        %v312 = vpop.permute.xlu0 %311
        %vm313 = vcmp.lt.s32.totalorder %v278, 127
        %v314 = vsel %vm313, %v310, %v312
        %v315 = vsel %vm313, %v312, %v310
        %v316 = vsel %vm288, 1, 0
        %v317 = vsel %vm289, 1, 0
        %vm318 = vcmp.eq.s32.totalorder %v316, 1
        %vm319 = vcmp.eq.s32.totalorder %v317, 1
        %v320 = vsel %vm318, %v314, 0.0
        %v321 = vsel %vm319, %v315, 0.0
        %323 = vset.pattern.permute.xlu0 0
        %324 = vperm.xlu0 %323, %v290
        %v325 = vpop.permute.xlu0 %324
        %v327 = vmul.f32 %v307, %v325
        %v328 = vmul.f32 %v308, %v325
        %329 = vset.pattern.permute.xlu0 1
        %330 = vperm.xlu0 %329, %v290
        %v331 = vpop.permute.xlu0 %330
        %v333 = vmul.f32 %v292, %v331
        %v334 = vmul.f32 %v293, %v331
        %v335 = vadd.f32 %v327, %v333
        %v336 = vadd.f32 %v328, %v334
        %337 = vset.pattern.permute.xlu0 2
        %338 = vperm.xlu0 %337, %v290
        %v339 = vpop.permute.xlu0 %338
        %v341 = vmul.f32 %v320, %v339
        %v342 = vmul.f32 %v321, %v339
        %v343 = vadd.f32 %v335, %v341
        %v344 = vadd.f32 %v336, %v342
        %345 = vset.pattern.permute.xlu0 3
        %346 = vperm.xlu0 %345, %v290
        %v347 = vpop.permute.xlu0 %346
        %v349 = vmul.f32 %v307, %v347
        %v350 = vmul.f32 %v308, %v347
        %351 = vset.pattern.permute.xlu0 4
        %352 = vperm.xlu0 %351, %v290
        %v353 = vpop.permute.xlu0 %352
        %v355 = vmul.f32 %v292, %v353
        %v356 = vmul.f32 %v293, %v353
        %v357 = vadd.f32 %v349, %v355
        %v358 = vadd.f32 %v350, %v356
        %359 = vset.pattern.permute.xlu0 5
        %360 = vperm.xlu0 %359, %v290
        %v361 = vpop.permute.xlu0 %360
        %v363 = vmul.f32 %v320, %v361
        %v364 = vmul.f32 %v321, %v361
        %v365 = vadd.f32 %v357, %v363
        %v366 = vadd.f32 %v358, %v364
        %367 = vset.pattern.permute.xlu0 6
        %368 = vperm.xlu0 %367, %v290
        %v369 = vpop.permute.xlu0 %368
        %v371 = vmul.f32 %v307, %v369
        %v372 = vmul.f32 %v308, %v369
        %373 = vset.pattern.permute.xlu0 7
        %374 = vperm.xlu0 %373, %v290
        %v375 = vpop.permute.xlu0 %374
        %v377 = vmul.f32 %v292, %v375
        %v378 = vmul.f32 %v293, %v375
        %v379 = vadd.f32 %v371, %v377
        %v380 = vadd.f32 %v372, %v378
        %381 = vset.pattern.permute.xlu0 8
        %382 = vperm.xlu0 %381, %v290
        %v383 = vpop.permute.xlu0 %382
        %v385 = vmul.f32 %v320, %v383
        %v386 = vmul.f32 %v321, %v383
        %v387 = vadd.f32 %v379, %v385
        %v388 = vadd.f32 %v380, %v386
        %389 = vrot.lane.b32.xlu0 %v343, 16
        %v390 = vpop.permute.xlu0 %389
        %391 = vrot.lane.b32.xlu0 %v344, 16
        %v392 = vpop.permute.xlu0 %391
        %vm393 = vcmp.lt.s32.totalorder %v278, 16
        %v394 = vsel %vm393, %v390, %v392
        %v395 = vsel %vm393, %v392, %v390
        %v396 = vsel %vm282, 1, 0
        %v397 = vsel %vm283, 1, 0
        %vm398 = vcmp.eq.s32.totalorder %v396, 1
        %vm399 = vcmp.eq.s32.totalorder %v397, 1
        %v400 = vsel %vm398, %v395, 0.0
        %v401 = vsel %vm399, %v394, 0.0
        %v402 = vadd.f32 %v400, %v365
        %v403 = vadd.f32 %v401, %v366
        %404 = vrot.lane.b32.xlu0 %v387, 112
        %v405 = vpop.permute.xlu0 %404
        %406 = vrot.lane.b32.xlu0 %v388, 112
        %v407 = vpop.permute.xlu0 %406
        %vm408 = vcmp.lt.s32.totalorder %v278, 112
        %v409 = vsel %vm408, %v405, %v407
        %v410 = vsel %vm408, %v407, %v405
        %v411 = vsel %vm284, 1, 0
        %v412 = vsel %vm285, 1, 0
        %vm413 = vcmp.eq.s32.totalorder %v411, 1
        %vm414 = vcmp.eq.s32.totalorder %v412, 1
        %v415 = vsel %vm413, %v409, 0.0
        %v416 = vsel %vm414, %v410, 0.0
        %v417 = vadd.f32 %v402, %v415
        %v418 = vadd.f32 %v403, %v416
        %420 = vset.pattern.permute.xlu0 0
        %421 = vperm.xlu0 %420, %v291
        %v422 = vpop.permute.xlu0 %421
        %v424 = vadd.f32 %v417, %v422
        %v425 = vadd.f32 %v418, %v422
        %v426 = vmax.f32 %v424, 0.0
        %v427 = vmax.f32 %v425, 0.0
        %428 = vst [vmem:[#allocation2] sm:$0xff] %v426
        %429 = vst [vmem:[#allocation2 + $0x8] sm:$0xff] %v427
        %v430 = vld [vmem:[%s3] sm:$0xff]
        %v431 = vld [vmem:[%s3 + $0x8] sm:$0xff]
        %v432 = vld [vmem:[%s3 + $0x10] sm:$0xff]
        %v433 = vld [vmem:[%s3 + $0x18] sm:$0xff]
        %v434 = vld [vmem:[#allocation2] sm:$0xff]
        %v435 = vld [vmem:[#allocation2 + $0x8] sm:$0xff]
        %v436 = vld [vmem:[#allocation2 + $0x10] sm:$0xff]
        %v437 = vld [vmem:[#allocation2 + $0x18] sm:$0xff]
        %vm438 = vcmask 130048
        %v440 = vsel %vm438, %v430, 0
        %v443 = vsel %vm438, %v431, 0
        %v446 = vsel %vm438, %v432, 0
        %v449 = vsel %vm438, %v433, 0
        %451 = vmatpush.msra.mxu0 0.0
        %452 = vmatpush.msra.mxu0 0.0
        %453 = vmatpush.msra.mxu0 0.0
        %454 = vmatpush.msra.mxu0 0.0
        %455 = vmatpush.msra.mxu0 0.0
        %456 = vmatpush.msra.mxu0 0.0
        %457 = vmatpush.msra.mxu0 0.0
        %458 = vmatpush.msra.mxu0 0.0
        %459 = vmatpush.msra.mxu0 0.0
        %460 = vmatpush.msra.mxu0 0.0
        %461 = vmatpush.msra.mxu0 0.0
        %462 = vmatpush.msra.mxu0 0.0
        %463 = vmatpush.msra.mxu0 0.0
        %464 = vmatpush.msra.mxu0 0.0
        %465 = vmatpush.msra.mxu0 %v436
        %466 = vmatpush.msra.mxu0 %v434
        %467 = vmatmul.f32.gmra.mxu0 %v440
        %v468 = vpop.f32.mrf.mxu0
        %v469 = vadd.f32 0.0, %v468
        %470 = vmatmul.f32.gmra.mxu0 %v443
        %v471 = vpop.f32.mrf.mxu0
        %v472 = vadd.f32 0.0, %v471
        %473 = vmatmul.f32.gmra.mxu0 %v446
        %v474 = vpop.f32.mrf.mxu0
        %v475 = vadd.f32 0.0, %v474
        %476 = vmatmul.f32.gmra.mxu0 %v449
        %v477 = vpop.f32.mrf.mxu0
        %v478 = vadd.f32 0.0, %v477
        %479 = vdwg.mxu0
        %480 = vmatpush.msra.mxu0 0.0
        %481 = vmatpush.msra.mxu0 0.0
        %482 = vmatpush.msra.mxu0 0.0
        %483 = vmatpush.msra.mxu0 0.0
        %484 = vmatpush.msra.mxu0 0.0
        %485 = vmatpush.msra.mxu0 0.0
        %486 = vmatpush.msra.mxu0 0.0
        %487 = vmatpush.msra.mxu0 0.0
        %488 = vmatpush.msra.mxu0 0.0
        %489 = vmatpush.msra.mxu0 0.0
        %490 = vmatpush.msra.mxu0 0.0
        %491 = vmatpush.msra.mxu0 0.0
        %492 = vmatpush.msra.mxu0 0.0
        %493 = vmatpush.msra.mxu0 0.0
        %494 = vmatpush.msra.mxu0 %v437
        %495 = vmatpush.msra.mxu0 %v435
        %496 = vmatmul.f32.gmra.mxu0 %v440
        %v497 = vpop.f32.mrf.mxu0
        %v498 = vadd.f32 0.0, %v497
        %499 = vmatmul.f32.gmra.mxu0 %v443
        %v500 = vpop.f32.mrf.mxu0
        %v501 = vadd.f32 0.0, %v500
        %502 = vmatmul.f32.gmra.mxu0 %v446
        %v503 = vpop.f32.mrf.mxu0
        %v504 = vadd.f32 0.0, %v503
        %505 = vmatmul.f32.gmra.mxu0 %v449
        %v506 = vpop.f32.mrf.mxu0
        %v507 = vadd.f32 0.0, %v506
        %508 = vdwg.mxu0
        %v509 = vld [vmem:[%s4] sm:$0xff]
        %v510 = vld [vmem:[%s4 + $0x8] sm:$0xff]
        %512 = vset.pattern.permute.xlu0 0
        %513 = vperm.xlu0 %512, %v509
        %v514 = vpop.permute.xlu0 %513
        %517 = vset.pattern.permute.xlu0 0
        %518 = vperm.xlu0 %517, %v510
        %v519 = vpop.permute.xlu0 %518
        %v521 = vadd.f32 %v469, %v514
        %v522 = vadd.f32 %v498, %v514
        %v523 = vadd.f32 %v472, %v519
        %v524 = vadd.f32 %v501, %v519
        %v525 = vmax.f32 %v521, 0.0
        %v526 = vmax.f32 %v522, 0.0
        %v527 = vmax.f32 %v523, 0.0
        %v528 = vmax.f32 %v524, 0.0
        %v529 = vld [vmem:[%s5] sm:$0xff]
        %v530 = vld [vmem:[%s5 + $0x8] sm:$0xff]
        %532 = vset.pattern.permute.xlu0 0
        %533 = vperm.xlu0 %532, %v529
        %v534 = vpop.permute.xlu0 %533
        %537 = vset.pattern.permute.xlu0 0
        %538 = vperm.xlu0 %537, %v530
        %v539 = vpop.permute.xlu0 %538
        %v541 = vmul.f32 %v525, %v534
        %v542 = vmul.f32 %v526, %v534
        %v543 = vmul.f32 %v527, %v539
        %v544 = vmul.f32 %v528, %v539
        %v545 = vadd.f32 %v541, %v475
        %v546 = vadd.f32 %v542, %v504
        %v547 = vadd.f32 %v543, %v478
        %v548 = vadd.f32 %v544, %v507
        %v549 = vld [vmem:[%s6] sm:$0xff]
        %v550 = vld [vmem:[%s6 + $0x8] sm:$0xff]
        %552 = vset.pattern.permute.xlu0 0
        %553 = vperm.xlu0 %552, %v549
        %v554 = vpop.permute.xlu0 %553
        %557 = vset.pattern.permute.xlu0 0
        %558 = vperm.xlu0 %557, %v550
        %v559 = vpop.permute.xlu0 %558
        %v561 = vadd.f32 %v545, %v554
        %v562 = vadd.f32 %v546, %v554
        %v563 = vadd.f32 %v547, %v559
        %v564 = vadd.f32 %v548, %v559
        %v565 = vmax.f32 %v561, 0.0
        %v566 = vmax.f32 %v562, 0.0
        %v567 = vmax.f32 %v563, 0.0
        %v568 = vmax.f32 %v564, 0.0
        %569 = vst [vmem:[%s271] sm:$0xff] %v565
        %570 = vst [vmem:[%s271 + $0x8] sm:$0xff] %v566
        %571 = vst [vmem:[%s271 + $0x10] sm:$0xff] %v567
        %572 = vst [vmem:[%s271 + $0x18] sm:$0xff] %v568
        %s573 = sand.u32 %s181, 1
        %s574 = scalar_lea.sflag [#allocation4], %s573
        %s575 = sand.u32 %s181, 1
        %s576 = smul.addr %s575, 32
        %s577 = scalar_lea.vmem [#allocation3], %s576
        // Predicated region
        $region49: #{tpu_custom_call.1} parent=47 // pred_check
          %p578 = pneg %p191
        $region50: #{tpu_custom_call.1} parent=47 // pred_check_branch
          %580 = sbr.rel (%p578) target = $region52
        $region51: #{tpu_custom_call.1} parent=47 // pred_region
          %582 = vsyncadd %s574, 0
          %s583 = smul.addr %s21, 4
          %s584 = smul.addr %s583, 8
          %s585 = scalar_lea.hbm %s7, %s584
          %s586 = sshll.u32 %s577, 4
          %s587 = int_to_ptr.vmem [resolvable:$true] %s586
          %s588 = sshll.u32 %s585, 4
          %s589 = int_to_ptr.hbm [resolvable:$true] %s588
          %594 = dma.vmem_to_hbm [thread:$0]  %s587, 512, %s589, %s574, 256, 256, 16
        $region52: #{tpu_custom_call.1} parent=47 // pred_fallthru
          _
      $region48: #{tpu_custom_call.1} parent=5 // pred_fallthru
        _
      %p595 = scmp.le.s32.totalorder 2, %s16
      // Predicated region
      $region53: #{tpu_custom_call.1} parent=5 // pred_check
        %p596 = pneg %p595
      $region54: #{tpu_custom_call.1} parent=5 // pred_check_branch
        %598 = sbr.rel (%p596) target = $region56
      $region55: #{tpu_custom_call.1} parent=5 // pred_region
        %s599 = ssub.s32 %s16, 2
        // Predicated region
        $region57: #{tpu_custom_call.1} parent=55 // pred_check
          %p600 = pneg %p197
        $region58: #{tpu_custom_call.1} parent=55 // pred_check_branch
          %602 = sbr.rel (%p600) target = $region60
        $region59: #{tpu_custom_call.1} parent=55 // pred_region
          %s603 = sand.u32 %s182, 1
          %s604 = scalar_lea.sflag [#allocation4], %s603
          %s605 = sand.u32 %s182, 1
          %s606 = smul.addr %s605, 32
          %s607 = scalar_lea.vmem [#allocation3], %s606
          %609 = dma.done %s604, 512
        $region60: #{tpu_custom_call.1} parent=55 // pred_fallthru
          _
      $region56: #{tpu_custom_call.1} parent=5 // pred_fallthru
        _
    $region6: #{tpu_custom_call.1} parent=1 // loop_footer
      %s20 = sadd.s32 1, %s16
    $region7: #{tpu_custom_call.1} parent=1 // loop_footer_branch
      %15 = sbr.rel target = $region3
    $region8: #{tpu_custom_call.1} parent=1 // loop_exit
      _
    %610 = vsyncpa [#allocation4], 1
    %s611 = scalar_lea.sflag [#allocation4], 1
    %612 = vsyncpa %s611, 1

</llo_original>
